<compile_context>
chip_gen: v7x
topology: tpu7x:2x2x1
jax: 0.10.0
libtpu: 0.0.40
codegen_flags: <defaults>
</compile_context>

<pallas_src>
import jax
import jax.numpy as jnp
from jax.experimental import pallas as pl
from jax.experimental.pallas import tpu as pltpu


def prompt_concat_kernel(prompt_hbm, x_hbm, out_hbm, sem):
    # prompt_hbm: (P, D)      HBM ref (memory_space=pl.ANY)
    # x_hbm:      (B, S, D)   HBM ref
    # out_hbm:    (B, P+S, D) HBM ref (output)
    # sem:        DMA semaphores, shape (2,)
    b = pl.program_id(0)
    P = prompt_hbm.shape[0]
    S = x_hbm.shape[1]

    # Two HBM->HBM copies per batch element; both are in flight concurrently.
    cp_prompt = pltpu.make_async_copy(
        prompt_hbm,                          # (P, D)
        out_hbm.at[b, pl.ds(0, P), :],       # (P, D)
        sem.at[0],
    )
    cp_x = pltpu.make_async_copy(
        x_hbm.at[b],                         # (S, D)
        out_hbm.at[b, pl.ds(P, S), :],       # (S, D)
        sem.at[1],
    )
    cp_prompt.start()
    cp_x.start()
    cp_prompt.wait()
    cp_x.wait()


def prompt_tuning_forward(prompt_tokens, x):
    """prompt_tokens: (P, D), x: (B, S, D) -> (B, P+S, D)."""
    P, D = prompt_tokens.shape
    B, S, Dx = x.shape
    assert D == Dx, "embed_dim mismatch"

    # Match output dtype (torch.cat would promote; here we follow x's dtype).
    prompt_tokens = prompt_tokens.astype(x.dtype)

    itemsize = jnp.dtype(x.dtype).itemsize
    cost = pl.CostEstimate(
        flops=0,
        transcendentals=0,
        bytes_accessed=(B * S * D + P * D + B * (P + S) * D) * itemsize,
    )

    out_shape = jax.ShapeDtypeStruct((B, P + S, D), x.dtype)

    return pl.pallas_call(
        prompt_concat_kernel,
        out_shape=out_shape,
        grid_spec=pltpu.PrefetchScalarGridSpec(
            num_scalar_prefetch=0,
            grid=(B,),
            in_specs=[
                pl.BlockSpec(memory_space=pl.ANY),   # prompt stays in HBM
                pl.BlockSpec(memory_space=pl.ANY),   # x stays in HBM
            ],
            out_specs=pl.BlockSpec(memory_space=pl.ANY),  # out written via DMA
            scratch_shapes=[pltpu.SemaphoreType.DMA((2,))],
        ),
        compiler_params=pltpu.CompilerParams(
            dimension_semantics=("parallel",),   # v7x: shard batch over 2 TCs
        ),
        cost_estimate=cost,
    )(prompt_tokens, x)


if __name__ == "__main__":
    key = jax.random.PRNGKey(0)
    k_prompt, k_x = jax.random.split(key)

    # Small but tile-aligned demo shapes: P multiple of 8 (f32 sublanes),
    # D multiple of 128 (lane-dense) -> unmasked, tile-aligned DMAs.
    batch = 2
    seq = 8
    embed_dim = 128
    prompt_len = 8

    prompt_tokens = jax.random.normal(
        k_prompt, (prompt_len, embed_dim), dtype=jnp.float32
    )
    x = jax.random.normal(k_x, (batch, seq, embed_dim), dtype=jnp.float32)

    out = prompt_tuning_forward(prompt_tokens, x)
    out = jax.block_until_ready(out)

    # Reference check against plain JAX concat semantics.
    ref = jnp.concatenate(
        [jnp.broadcast_to(prompt_tokens[None], (batch, prompt_len, embed_dim)), x],
        axis=1,
    )
    assert out.shape == (batch, prompt_len + seq, embed_dim)
    assert jnp.allclose(out, ref), "Pallas output mismatch vs reference"

    print("KERNEL_OK")
</pallas_src>

<mosaic_0001>
module attributes {stable_mosaic.version = 11 : i64} {
  func.func @prompt_concat_kernel(%arg0: i32, %arg1: memref<8x128xf32, #tpu.memory_space<any>>, %arg2: memref<2x8x128xf32, #tpu.memory_space<any>>, %arg3: memref<2x16x128xf32, #tpu.memory_space<any>>, %arg4: memref<2x!tpu.dma_semaphore, #tpu.memory_space<semaphore_mem>>) attributes {dimension_semantics = [#tpu.dimension_semantics<parallel>], iteration_bounds = array<i64: 2>, scalar_prefetch = 0 : i64, scratch_operands = 1 : i64, tpu.core_type = #tpu.core_type<tc>, window_params = [{}, {}, {}]} {
    %c0_i32 = arith.constant 0 : i32
    %c0_i32_0 = arith.constant 0 : i32
    %c0_i32_1 = arith.constant 0 : i32
    %0 = tpu.memref_slice %arg3[%arg0, %c0_i32_0, %c0_i32_1] : memref<2x16x128xf32, #tpu.memory_space<any>> -> memref<1x8x128xf32, #tpu.memory_space<any>>
    %1 = tpu.memref_squeeze %0 : memref<1x8x128xf32, #tpu.memory_space<any>> -> memref<8x128xf32, #tpu.memory_space<any>>
    %2 = tpu.memref_slice %arg4[%c0_i32] : memref<2x!tpu.dma_semaphore, #tpu.memory_space<semaphore_mem>> -> memref<1x!tpu.dma_semaphore, #tpu.memory_space<semaphore_mem>>
    %3 = tpu.memref_squeeze %2 : memref<1x!tpu.dma_semaphore, #tpu.memory_space<semaphore_mem>> -> memref<!tpu.dma_semaphore, #tpu.memory_space<semaphore_mem>>
    tpu.enqueue_dma source(%arg1 : memref<8x128xf32, #tpu.memory_space<any>>) target(%1 : memref<8x128xf32, #tpu.memory_space<any>>) target_semaphore(%3 : memref<!tpu.dma_semaphore, #tpu.memory_space<semaphore_mem>>)
    %c1_i32 = arith.constant 1 : i32
    %c0_i32_2 = arith.constant 0 : i32
    %c0_i32_3 = arith.constant 0 : i32
    %4 = tpu.memref_slice %arg2[%arg0, %c0_i32_2, %c0_i32_3] : memref<2x8x128xf32, #tpu.memory_space<any>> -> memref<1x8x128xf32, #tpu.memory_space<any>>
    %5 = tpu.memref_squeeze %4 : memref<1x8x128xf32, #tpu.memory_space<any>> -> memref<8x128xf32, #tpu.memory_space<any>>
    %c8_i32 = arith.constant 8 : i32
    %c0_i32_4 = arith.constant 0 : i32
    %6 = tpu.memref_slice %arg3[%arg0, %c8_i32, %c0_i32_4] : memref<2x16x128xf32, #tpu.memory_space<any>> -> memref<1x8x128xf32, #tpu.memory_space<any>>
    %7 = tpu.memref_squeeze %6 : memref<1x8x128xf32, #tpu.memory_space<any>> -> memref<8x128xf32, #tpu.memory_space<any>>
    %8 = tpu.memref_slice %arg4[%c1_i32] : memref<2x!tpu.dma_semaphore, #tpu.memory_space<semaphore_mem>> -> memref<1x!tpu.dma_semaphore, #tpu.memory_space<semaphore_mem>>
    %9 = tpu.memref_squeeze %8 : memref<1x!tpu.dma_semaphore, #tpu.memory_space<semaphore_mem>> -> memref<!tpu.dma_semaphore, #tpu.memory_space<semaphore_mem>>
    tpu.enqueue_dma source(%5 : memref<8x128xf32, #tpu.memory_space<any>>) target(%7 : memref<8x128xf32, #tpu.memory_space<any>>) target_semaphore(%9 : memref<!tpu.dma_semaphore, #tpu.memory_space<semaphore_mem>>)
    %c0_i32_5 = arith.constant 0 : i32
    %c0_i32_6 = arith.constant 0 : i32
    %c0_i32_7 = arith.constant 0 : i32
    %10 = tpu.memref_slice %arg3[%arg0, %c0_i32_6, %c0_i32_7] : memref<2x16x128xf32, #tpu.memory_space<any>> -> memref<1x8x128xf32, #tpu.memory_space<any>>
    %11 = tpu.memref_squeeze %10 : memref<1x8x128xf32, #tpu.memory_space<any>> -> memref<8x128xf32, #tpu.memory_space<any>>
    %12 = tpu.memref_slice %arg4[%c0_i32_5] : memref<2x!tpu.dma_semaphore, #tpu.memory_space<semaphore_mem>> -> memref<1x!tpu.dma_semaphore, #tpu.memory_space<semaphore_mem>>
    %13 = tpu.memref_squeeze %12 : memref<1x!tpu.dma_semaphore, #tpu.memory_space<semaphore_mem>> -> memref<!tpu.dma_semaphore, #tpu.memory_space<semaphore_mem>>
    tpu.wait_dma2 semaphore(%13 : memref<!tpu.dma_semaphore, #tpu.memory_space<semaphore_mem>>) src(%arg1 : memref<8x128xf32, #tpu.memory_space<any>>) dst(%11 : memref<8x128xf32, #tpu.memory_space<any>>)
    %c1_i32_8 = arith.constant 1 : i32
    %c0_i32_9 = arith.constant 0 : i32
    %c0_i32_10 = arith.constant 0 : i32
    %14 = tpu.memref_slice %arg2[%arg0, %c0_i32_9, %c0_i32_10] : memref<2x8x128xf32, #tpu.memory_space<any>> -> memref<1x8x128xf32, #tpu.memory_space<any>>
    %15 = tpu.memref_squeeze %14 : memref<1x8x128xf32, #tpu.memory_space<any>> -> memref<8x128xf32, #tpu.memory_space<any>>
    %c8_i32_11 = arith.constant 8 : i32
    %c0_i32_12 = arith.constant 0 : i32
    %16 = tpu.memref_slice %arg3[%arg0, %c8_i32_11, %c0_i32_12] : memref<2x16x128xf32, #tpu.memory_space<any>> -> memref<1x8x128xf32, #tpu.memory_space<any>>
    %17 = tpu.memref_squeeze %16 : memref<1x8x128xf32, #tpu.memory_space<any>> -> memref<8x128xf32, #tpu.memory_space<any>>
    %18 = tpu.memref_slice %arg4[%c1_i32_8] : memref<2x!tpu.dma_semaphore, #tpu.memory_space<semaphore_mem>> -> memref<1x!tpu.dma_semaphore, #tpu.memory_space<semaphore_mem>>
    %19 = tpu.memref_squeeze %18 : memref<1x!tpu.dma_semaphore, #tpu.memory_space<semaphore_mem>> -> memref<!tpu.dma_semaphore, #tpu.memory_space<semaphore_mem>>
    tpu.wait_dma2 semaphore(%19 : memref<!tpu.dma_semaphore, #tpu.memory_space<semaphore_mem>>) src(%15 : memref<8x128xf32, #tpu.memory_space<any>>) dst(%17 : memref<8x128xf32, #tpu.memory_space<any>>)
    return
  }
}

</mosaic_0001>

<llo_original>
// kernel: tpu_custom_call.1
$region0: #{tpu_custom_call.1}
  #allocation0 [shape = 'u32[]', space=smem, size = 0x4, offset = 0x4, fixed_abs, tag = 'smem constant byte address 0x4 - core index']
  #allocation1 [shape = 'u32[144,128]{1,0:T(1,128)}', space=vmem, size = 0x12000, scoped, tag = 'internal scratch']
  #allocation2 [shape = 's32[2]{0}', space=sflag, size = 0x8, scoped, tag = 'scratch operand']
  #allocation3 [shape = 's32[]', space=sflag, size = 0x4, offset = 0, fixed_abs, tag = 'sflag constant byte address 0x0 - dummy sync flag']
  #allocation4 [shape = 'u32[0]{0}', space=smem, size = 0, offset = 0, fixed_abs, tag = 'smem constant byte address 0x0 - null']
  #allocation5 [shape = 's32[]', space=sflag, size = 0x4, offset = 0, fixed_abs, tag = 'sflag constant byte address 0x0 - dummy sync flag']
  #allocation6 [shape = 'u32[0]{0}', space=smem, size = 0, offset = 0, fixed_abs, tag = 'smem constant byte address 0x0 - null']
  %s0 = inlined_call_operand.hbm [shape: f32[8,128], index: 0, kind: input, shape index: {}]
  %s1 = inlined_call_operand.hbm [shape: f32[2,8,128], index: 1, kind: input, shape index: {}]
  %s2 = inlined_call_operand.hbm [shape: f32[2,16,128], index: 2, kind: output, shape index: {}]
  %s3 = sld [smem:[#allocation0]]
  $region9: #{tpu_custom_call.1} parent=0
    _
  %s5 = ssub.s32 1, %s3
  %s6 = scalar_select 0, %s5, %s3
  loop: start=0, step=1, limit=2
  $region2: #{tpu_custom_call.1} parent=0 // loop_pre_header
    _
  $region3: #{tpu_custom_call.1} parent=0 // loop_header
    %s8 = sphi 0, %s12
    %p9 = scmp.ge.s32.totalorder %s8, 2
  $region4: #{tpu_custom_call.1} parent=0 // loop_header_branch
    %11 = sbr.rel (%p9) target = $region8
  $region5: #{tpu_custom_call.1} parent=0 // loop_body
    %s13 = sadd.s32 %s8, 1
    %s14 = smul.u32 %s8, 16
    %s15 = smul.addr %s14, 16
    %s16 = scalar_lea.hbm %s2, %s15
    %s18 = sshll.u32 1, 14
    %s19 = sxor.u32 4294967295, %s18
    %s22 = sshll.u32 3, 24
    %s23 = sxor.u32 4294967295, %s22
    %s24 = sand.u32 0, %s23
    %s26 = sor.u32 %s24, 0
    %29 = dma.general %s0, 128, %s16, [#allocation2], [#allocation3], [#allocation4], %s26, 0
    %s30 = smul.u32 %s8, 8
    %s31 = smul.addr %s30, 16
    %s32 = scalar_lea.hbm %s1, %s31
    %s33 = sadd.s32 8, %s14
    %s34 = smul.addr %s33, 16
    %s35 = scalar_lea.hbm %s2, %s34
    %s36 = scalar_lea.sflag [#allocation2], 1
    %s38 = sshll.u32 1, 14
    %s39 = sxor.u32 4294967295, %s38
    %s42 = sshll.u32 3, 24
    %s43 = sxor.u32 4294967295, %s42
    %s44 = sand.u32 0, %s43
    %s46 = sor.u32 %s44, 0
    %49 = dma.general %s32, 128, %s35, %s36, [#allocation5], [#allocation6], %s46, 0
    %s50 = smul.u32 8, 1
    %s51 = sshll.u32 %s50, 4
    %52 = dma.done [#allocation2], %s51
    %s53 = sshll.u32 %s50, 4
    %54 = dma.done %s36, %s53
  $region6: #{tpu_custom_call.1} parent=0 // loop_footer
    %s12 = sadd.s32 1, %s8
  $region7: #{tpu_custom_call.1} parent=0 // loop_footer_branch
    %7 = sbr.rel target = $region3
  $region8: #{tpu_custom_call.1} parent=0 // loop_exit
    _
  %55 = vsyncmov [#allocation2]
  %s56 = vpop.sfrf %55
  %p57 = scmp.eq.s32.totalorder %s56, 0
  %p58 = pneg %p57
  %60 = shalt.err (%p58)
  %s61 = scalar_lea.sflag [#allocation2], 1
  %62 = vsyncmov %s61
  %s63 = vpop.sfrf %62
  %p64 = scmp.eq.s32.totalorder %s63, 0
  %p65 = pneg %p64
  %67 = shalt.err (%p65)

</llo_original>
